<compile_context>
chip_gen: v6e
topology: v6e:2x2x1
jax: 0.10.0
libtpu: 0.0.40
codegen_flags: <defaults>
</compile_context>

<pallas_src>
import math

import jax
import jax.numpy as jnp
from jax.experimental import pallas as pl
from jax.experimental.pallas import tpu as pltpu


# Single-block (no-grid) path only below this total size; above it, tile.
_SINGLE_BLOCK_BYTES = 2 * 1024 * 1024
# Target tile size for the gridded path (safe on v5e/v6e/v7x defaults:
# in+out double-buffered -> ~4x tile bytes resident in scoped VMEM).
_TILE_BYTES = 2 * 1024 * 1024


def _copy_kernel(x_ref, o_ref):
    # Pure identity: one lane-dense block through VMEM.
    o_ref[...] = x_ref[...]


def _sublane_multiple(dtype):
    """Rows multiple that keeps blocks on native packed-tile boundaries."""
    itemsize = jnp.dtype(dtype).itemsize
    # f32 vreg tile is (8,128); bf16 packs (16,128); int8/fp8 pack (32,128).
    return max(8, 32 // itemsize)


def _pick_lanes(total, sub):
    """Pick a lane width (multiple of 128) so rows stays a multiple of `sub`.

    Falls back to 128 lanes (caller pads rows up) — never a (1, N) shape that
    wastes 7/8 of every vreg's sublanes and forces masked stores.
    """
    for lanes in (1024, 512, 256, 128):
        if total % lanes == 0 and (total // lanes) % sub == 0:
            return lanes
    return 128


def _round_up(x, m):
    return ((x + m - 1) // m) * m


def pallas_identity(x):
    """Identity copy of an arbitrary-shape tensor via a Pallas TPU kernel.

    Small tensors: a single lane-dense block, no grid (zero per-step loop
    overhead).  Large tensors: a 1-D grid of ~2 MiB lane-dense tiles, grid
    axis marked "parallel" so v7x's two TensorCores can share the copy.
    NOTE: this is a plain copy (read + write HBM traffic); it does not alias
    its input — donate the input at the call site if buffer reuse matters.
    """
    orig_shape = x.shape
    total = math.prod(orig_shape) if orig_shape else 1
    itemsize = jnp.dtype(x.dtype).itemsize
    sub = _sublane_multiple(x.dtype)
    lanes = _pick_lanes(total, sub)
    rows_needed = pl.cdiv(total, lanes)

    if rows_needed * lanes * itemsize <= _SINGLE_BLOCK_BYTES:
        # Whole array as one block; rows padded to the sublane pack so the
        # block shape stays on native (sub, 128) tile boundaries.
        rows = _round_up(rows_needed, sub)
        block_rows = rows
        grid = None
    else:
        block_rows = max(sub, (_TILE_BYTES // (lanes * itemsize)) // sub * sub)
        rows = _round_up(rows_needed, block_rows)
        grid = (rows // block_rows,)

    flat = x.reshape(-1)
    padded = rows * lanes
    if padded != total:
        flat = jnp.pad(flat, (0, padded - total))
    x2 = flat.reshape(rows, lanes)

    if grid is None:
        out2 = pl.pallas_call(
            _copy_kernel,
            out_shape=jax.ShapeDtypeStruct((rows, lanes), x2.dtype),
            in_specs=[pl.BlockSpec((rows, lanes), lambda: (0, 0))],
            out_specs=pl.BlockSpec((rows, lanes), lambda: (0, 0)),
        )(x2)
    else:
        out2 = pl.pallas_call(
            _copy_kernel,
            out_shape=jax.ShapeDtypeStruct((rows, lanes), x2.dtype),
            grid=grid,
            in_specs=[pl.BlockSpec((block_rows, lanes), lambda i: (i, 0))],
            out_specs=pl.BlockSpec((block_rows, lanes), lambda i: (i, 0)),
            compiler_params=pltpu.CompilerParams(
                dimension_semantics=("parallel",)),
        )(x2)

    out_flat = out2.reshape(-1)
    if padded != total:
        out_flat = out_flat[:total]
    return out_flat.reshape(orig_shape)


class MyCNN:
    """JAX/Pallas re-implementation of the (empty) PyTorch MyCNN module.

    The PyTorch reference defines no layers and its forward body is
    `y_hat = None; return y_hat`; downstream code expecting a tensor from
    forward() will break — this is faithful to the spec, not a bug.
    """

    def __init__(self):
        # No parameters in the reference __init__; nothing to initialize.
        pass

    def forward(self, x):
        # Exact reference semantics: no tensor work, no Pallas launch.
        y_hat = None
        return y_hat

    __call__ = forward


if __name__ == "__main__":
    key = jax.random.PRNGKey(0)

    # Small NCHW input consistent with an image-CNN signature.
    x = jax.random.normal(key, (2, 4, 16, 16), dtype=jnp.float32)

    # Single-block (no-grid) lane-dense path; verify bit-exact.
    out = pallas_identity(x)
    jax.block_until_ready(out)
    assert out.shape == x.shape and out.dtype == x.dtype
    assert bool(jnp.array_equal(out, x))

    # Slightly larger tensor (4 MiB f32) to exercise the tiled "parallel"
    # grid path (2 tiles of (512, 1024) f32 = 2 MiB each).
    xl = jax.random.normal(key, (4, 64, 64, 64), dtype=jnp.float32)
    outl = pallas_identity(xl)
    jax.block_until_ready(outl)
    assert outl.shape == xl.shape and outl.dtype == xl.dtype
    assert bool(jnp.array_equal(outl, xl))

    # Exact module semantics: forward returns None and does no tensor work.
    model = MyCNN()
    y_hat = model(x)
    assert y_hat is None

    print("KERNEL_OK")
</pallas_src>

<mosaic_0001>
module attributes {stable_mosaic.version = 11 : i64} {
  func.func @_copy_kernel(%arg0: memref<8x256xf32, #tpu.memory_space<vmem>>, %arg1: memref<8x256xf32, #tpu.memory_space<vmem>>) attributes {dimension_semantics = [], scalar_prefetch = 0 : i64, scratch_operands = 0 : i64, tpu.core_type = #tpu.core_type<tc>} {
    %c0 = arith.constant 0 : index
    %c0_0 = arith.constant 0 : index
    %0 = vector.load %arg0[%c0, %c0_0] : memref<8x256xf32, #tpu.memory_space<vmem>>, vector<8x256xf32>
    %c0_1 = arith.constant 0 : index
    %c0_2 = arith.constant 0 : index
    %1 = vector.load %arg1[%c0_1, %c0_2] : memref<8x256xf32, #tpu.memory_space<vmem>>, vector<8x256xf32>
    tpu.vector_store %arg1[%c0_1, %c0_2], %0 {strides = array<i32>} : memref<8x256xf32, #tpu.memory_space<vmem>>, vector<8x256xf32>,
    return
  }
}

</mosaic_0001>

<llo_original>
// kernel: tpu_custom_call.1
$region0: #{tpu_custom_call.1}
  #allocation0 [shape = 'u32[]', space=smem, size = 0x4, offset = 0x4, fixed_abs, tag = 'smem constant byte address 0x4 - core index']
  #allocation1 [shape = 'u32[144,128]{1,0:T(1,128)}', space=vmem, size = 0x12000, scoped, tag = 'internal scratch']
  %s0 = inlined_call_operand.hbm [shape: f32[8,256], index: 0, kind: input, shape index: {}]
  %s1 = inlined_call_operand.hbm [shape: f32[8,256], index: 1, kind: output, shape index: {}]
  %s2 = sld [smem:[#allocation0]]
  $region18: #{tpu_custom_call.1} parent=0
    _
  %s4 = ssub.s32 1, %s2
  %s5 = scalar_select 0, %s4, %s2
  $region1: #{tpu_custom_call.1} parent=0
    #allocation2 [shape = 'u8[8192]{0}', space=vmem, size = 0x2000, scoped, tag = 'input window, operand 0, single buffered']
    #allocation3 [shape = 's32[1]{0}', space=sflag, size = 0x4, scoped, tag = 'scoped memory for tpu_custom_call.1']
    #allocation4 [shape = 's32[1]{0}', space=sflag, size = 0x4, scoped, tag = 'scoped memory for tpu_custom_call.1']
    #allocation5 [shape = 'u8[8192]{0}', space=vmem, size = 0x2000, scoped, tag = 'output window, operand 0, single buffered']
    %6 = vsyncpa [#allocation3], 0
    %7 = vsyncpa [#allocation4], 0
    // Predicated region
    $region2: #{tpu_custom_call.1} parent=1 // pred_check
      _
    $region3: #{tpu_custom_call.1} parent=1 // pred_check_branch
      %9 = sbr.rel (0) target = $region5
    $region4: #{tpu_custom_call.1} parent=1 // pred_region
      %s11 = ssub.s32 256, 256
      %12 = vsyncadd [#allocation3], %s11
      %s14 = sshll.u32 [#allocation2], 4
      %s15 = int_to_ptr.vmem [resolvable:$true] %s14
      %17 = dma.hbm_to_vmem [thread:$0]  %s0, 256, %s15, [#allocation3]
    $region5: #{tpu_custom_call.1} parent=1 // pred_fallthru
      _
    // Predicated region
    $region6: #{tpu_custom_call.1} parent=1 // pred_check
      _
    $region7: #{tpu_custom_call.1} parent=1 // pred_check_branch
      %19 = sbr.rel (0) target = $region9
    $region8: #{tpu_custom_call.1} parent=1 // pred_region
      %20 = dma.done [#allocation3], 256
    $region9: #{tpu_custom_call.1} parent=1 // pred_fallthru
      _
    %v21 = vld [vmem:[#allocation2] sm:$0xff]
    %v22 = vld [vmem:[#allocation2 + $0x8] sm:$0xff]
    %23 = vst [vmem:[#allocation5] sm:$0xff] %v21
    %24 = vst [vmem:[#allocation5 + $0x8] sm:$0xff] %v22
    // Predicated region
    $region10: #{tpu_custom_call.1} parent=1 // pred_check
      _
    $region11: #{tpu_custom_call.1} parent=1 // pred_check_branch
      %26 = sbr.rel (0) target = $region13
    $region12: #{tpu_custom_call.1} parent=1 // pred_region
      %s28 = ssub.s32 256, 256
      %29 = vsyncadd [#allocation4], %s28
      %s31 = sshll.u32 [#allocation5], 4
      %s32 = int_to_ptr.vmem [resolvable:$true] %s31
      %34 = dma.vmem_to_hbm [thread:$0]  %s32, 256, %s1, [#allocation4]
    $region13: #{tpu_custom_call.1} parent=1 // pred_fallthru
      _
    // Predicated region
    $region14: #{tpu_custom_call.1} parent=1 // pred_check
      _
    $region15: #{tpu_custom_call.1} parent=1 // pred_check_branch
      %36 = sbr.rel (0) target = $region17
    $region16: #{tpu_custom_call.1} parent=1 // pred_region
      %37 = dma.done [#allocation4], 256
    $region17: #{tpu_custom_call.1} parent=1 // pred_fallthru
      _
    %38 = vsyncpa [#allocation3], 1
    %39 = vsyncpa [#allocation4], 1

</llo_original>
